<compile_context>
chip_gen: v7x
topology: tpu7x:2x2x1
jax: 0.10.0
libtpu: 0.0.40
codegen_flags: <defaults>
</compile_context>

<pallas_src>
import jax
import jax.numpy as jnp
from jax.experimental import pallas as pl
from jax.experimental.pallas import tpu as pltpu

ENCODER_NODES = [32, 16, 8]   # encoder_nodes argument of CustomSiam
BATCH = 16
EPS = 1e-5

E0, E1, E2 = ENCODER_NODES
PH = E2 // 2                                        # projector hidden = d // 2

# Sublane offsets of each (in, out) weight block inside the packed slab.
W_OFF = (0, E0, E0 + E1, E0 + E1 + E2, E0 + E1 + E2 + PH)   # 0, 32, 48, 56, 60
V_OFF = ((W_OFF[4] + 7) // 8) * 8                   # vector rows start at 64
P_ROWS = V_OFF + 8                                  # 72 (multiple of 8)
P_COLS = max(E1, E2, PH)                            # 16


# ------------------------------ Pallas kernel -------------------------------
def custom_siam_kernel(x_ref, p_ref, out_ref):
    """x_ref  : (B, 2*E0)    raw input, two views side-by-side on lanes
       p_ref  : (72, 16)     packed, pre-transposed weights + BN vectors + bias
       out_ref: (B, 4*E2)    [p1 | p2 | z1 | z2]
    """
    b = x_ref.shape[0]

    # Static views into the packed parameter slab (no extra DMAs).
    ew1 = p_ref[W_OFF[0]:W_OFF[1], 0:E1]      # (32, 16)
    ew2 = p_ref[W_OFF[1]:W_OFF[2], 0:E2]      # (16,  8)
    pw1 = p_ref[W_OFF[2]:W_OFF[3], 0:PH]      # ( 8,  4)
    pw2 = p_ref[W_OFF[3]:W_OFF[4], 0:E2]      # ( 4,  8)

    eg1, ebt1 = p_ref[V_OFF + 0:V_OFF + 1, 0:E1], p_ref[V_OFF + 1:V_OFF + 2, 0:E1]
    eg2, ebt2 = p_ref[V_OFF + 2:V_OFF + 3, 0:E2], p_ref[V_OFF + 3:V_OFF + 4, 0:E2]
    pg1, pbt1 = p_ref[V_OFF + 4:V_OFF + 5, 0:PH], p_ref[V_OFF + 5:V_OFF + 6, 0:PH]
    pb2 = p_ref[V_OFF + 6:V_OFF + 7, 0:E2]

    # x.chunk(2, dim=1) -> stack the two views on the batch axis (in-kernel,
    # so the wrapper needs no pre-kernel XLA concatenate fusion).
    x = x_ref[...]
    xs = jnp.concatenate([x[:, 0:E0], x[:, E0:2 * E0]], axis=0)   # (2B, E0)

    # Row mask selecting view-1 rows of the stacked activation.
    view0 = jax.lax.broadcasted_iota(jnp.int32, (2 * b, 1), 0) < b

    def bn2(h):
        """BatchNorm1d (training mode, biased variance) applied per B-row
        view of the stacked (2B, F) activation; single-pass statistics."""
        h0, h1 = h[:b], h[b:]
        mu0 = jnp.mean(h0, axis=0, keepdims=True)
        mu1 = jnp.mean(h1, axis=0, keepdims=True)
        q0 = jnp.mean(h0 * h0, axis=0, keepdims=True)
        q1 = jnp.mean(h1 * h1, axis=0, keepdims=True)
        mu = jnp.where(view0, mu0, mu1)
        var = jnp.where(view0, q0, q1) - mu * mu
        return (h - mu) * jax.lax.rsqrt(var + EPS)

    # Encoder, both views in one MXU pass per layer.  Linear biases eb1/eb2
    # are omitted: they are cancelled exactly by the BN mean subtraction.
    h = jnp.dot(xs, ew1, preferred_element_type=jnp.float32)
    h = jnp.maximum(bn2(h) * eg1 + ebt1, 0.0)
    h = jnp.dot(h, ew2, preferred_element_type=jnp.float32)
    h = jnp.maximum(bn2(h) * eg2 + ebt2, 0.0)
    z = bn2(h)                                   # BatchNorm1d(E2, affine=False)

    # Projector, both views in one MXU pass per layer (pb1 dropped, cancelled).
    h = jnp.dot(z, pw1, preferred_element_type=jnp.float32)
    h = jnp.maximum(bn2(h) * pg1 + pbt1, 0.0)
    p = jnp.dot(h, pw2, preferred_element_type=jnp.float32) + pb2

    # torch.cat([p1, p2, z1.detach(), z2.detach()], dim=1) -> static slice-stores.
    out_ref[:, 0 * E2:1 * E2] = p[:b]
    out_ref[:, 1 * E2:2 * E2] = p[b:]
    out_ref[:, 2 * E2:3 * E2] = z[:b]
    out_ref[:, 3 * E2:4 * E2] = z[b:]


# ------------------------------ JAX wrapper ---------------------------------
def pack_params(params):
    """Pack all surviving parameters into ONE slab (a single DMA).
    eb1, eb2, pb1 are dropped: a per-feature bias is exactly cancelled by the
    following BatchNorm (training mode) mean subtraction."""
    (ew1, eb1, eg1, ebt1, ew2, eb2, eg2, ebt2,
     pw1, pb1, pg1, pbt1, pw2, pb2) = params
    del eb1, eb2, pb1

    slab = jnp.zeros((P_ROWS, P_COLS), jnp.float32)
    slab = slab.at[W_OFF[0]:W_OFF[1], 0:E1].set(ew1)
    slab = slab.at[W_OFF[1]:W_OFF[2], 0:E2].set(ew2)
    slab = slab.at[W_OFF[2]:W_OFF[3], 0:PH].set(pw1)
    slab = slab.at[W_OFF[3]:W_OFF[4], 0:E2].set(pw2)
    slab = slab.at[V_OFF + 0, 0:E1].set(eg1[0])
    slab = slab.at[V_OFF + 1, 0:E1].set(ebt1[0])
    slab = slab.at[V_OFF + 2, 0:E2].set(eg2[0])
    slab = slab.at[V_OFF + 3, 0:E2].set(ebt2[0])
    slab = slab.at[V_OFF + 4, 0:PH].set(pg1[0])
    slab = slab.at[V_OFF + 5, 0:PH].set(pbt1[0])
    slab = slab.at[V_OFF + 6, 0:E2].set(pb2[0])
    return slab


@jax.jit
def custom_siam_forward(x, p_slab):
    b = x.shape[0]
    vmem = pl.BlockSpec(memory_space=pltpu.MemorySpace.VMEM)
    return pl.pallas_call(
        custom_siam_kernel,
        out_shape=jax.ShapeDtypeStruct((b, 4 * E2), jnp.float32),
        in_specs=[vmem, vmem],
        out_specs=vmem,
    )(x, p_slab)


# -------------------------- deterministic params ----------------------------
def init_params(key):
    def linear(k, fan_in, fan_out):
        k1, k2 = jax.random.split(k)
        bound = 1.0 / float(fan_in) ** 0.5
        w = jax.random.uniform(k1, (fan_in, fan_out), jnp.float32, -bound, bound)
        b = jax.random.uniform(k2, (1, fan_out), jnp.float32, -bound, bound)
        return w, b

    def bn(n):
        return jnp.ones((1, n), jnp.float32), jnp.zeros((1, n), jnp.float32)

    keys = jax.random.split(key, 4)
    ew1, eb1 = linear(keys[0], E0, E1)
    eg1, ebt1 = bn(E1)
    ew2, eb2 = linear(keys[1], E1, E2)
    eg2, ebt2 = bn(E2)
    pw1, pb1 = linear(keys[2], E2, PH)
    pg1, pbt1 = bn(PH)
    pw2, pb2 = linear(keys[3], PH, E2)
    return [ew1, eb1, eg1, ebt1, ew2, eb2, eg2, ebt2,
            pw1, pb1, pg1, pbt1, pw2, pb2]


# ---------------------------- pure-JAX reference ----------------------------
def _bn_ref(h, gamma=None, beta=None):
    mu = jnp.mean(h, axis=0, keepdims=True)
    var = jnp.mean((h - mu) ** 2, axis=0, keepdims=True)
    hn = (h - mu) * jax.lax.rsqrt(var + EPS)
    if gamma is not None:
        hn = hn * gamma + beta
    return hn


def reference_forward(x, params):
    (ew1, eb1, eg1, ebt1, ew2, eb2, eg2, ebt2,
     pw1, pb1, pg1, pbt1, pw2, pb2) = params
    x1, x2 = x[:, :E0], x[:, E0:2 * E0]

    def enc(v):
        h = jnp.maximum(_bn_ref(v @ ew1 + eb1, eg1, ebt1), 0.0)
        h = jnp.maximum(_bn_ref(h @ ew2 + eb2, eg2, ebt2), 0.0)
        return _bn_ref(h)

    def proj(z):
        h = jnp.maximum(_bn_ref(z @ pw1 + pb1, pg1, pbt1), 0.0)
        return h @ pw2 + pb2

    z1, z2 = enc(x1), enc(x2)
    return jnp.concatenate([proj(z1), proj(z2), z1, z2], axis=1)


if __name__ == "__main__":
    key = jax.random.PRNGKey(0)
    kx, kp = jax.random.split(key)
    x = jax.random.normal(kx, (BATCH, 2 * E0), jnp.float32)
    params = init_params(kp)           # reference keeps ALL biases
    p_slab = pack_params(params)       # kernel drops the BN-cancelled ones

    out = jax.block_until_ready(custom_siam_forward(x, p_slab))

    assert out.shape == (BATCH, 4 * E2), out.shape
    ref = reference_forward(x, params)
    assert jnp.all(jnp.isfinite(out))
    assert jnp.allclose(out, ref, atol=1e-3, rtol=1e-3), \
        float(jnp.max(jnp.abs(out - ref)))
    print("KERNEL_OK")
</pallas_src>

<mosaic_0001>
module attributes {stable_mosaic.version = 11 : i64} {
  func.func @custom_siam_kernel(%arg0: memref<16x64xf32, #tpu.memory_space<vmem>>, %arg1: memref<72x16xf32, #tpu.memory_space<vmem>>, %arg2: memref<16x32xf32, #tpu.memory_space<vmem>>) attributes {dimension_semantics = [], scalar_prefetch = 0 : i64, scratch_operands = 0 : i64, tpu.core_type = #tpu.core_type<tc>} {
    %c0 = arith.constant 0 : index
    %c0_0 = arith.constant 0 : index
    %0 = vector.load %arg1[%c0, %c0_0] : memref<72x16xf32, #tpu.memory_space<vmem>>, vector<32x16xf32>
    %c32 = arith.constant 32 : index
    %c0_1 = arith.constant 0 : index
    %1 = vector.load %arg1[%c32, %c0_1] : memref<72x16xf32, #tpu.memory_space<vmem>>, vector<16x8xf32>
    %c48 = arith.constant 48 : index
    %c0_2 = arith.constant 0 : index
    %2 = vector.load %arg1[%c48, %c0_2] : memref<72x16xf32, #tpu.memory_space<vmem>>, vector<8x4xf32>
    %c56 = arith.constant 56 : index
    %c0_3 = arith.constant 0 : index
    %3 = vector.load %arg1[%c56, %c0_3] : memref<72x16xf32, #tpu.memory_space<vmem>>, vector<4x8xf32>
    %c64 = arith.constant 64 : index
    %c0_4 = arith.constant 0 : index
    %4 = vector.load %arg1[%c64, %c0_4] : memref<72x16xf32, #tpu.memory_space<vmem>>, vector<1x16xf32>
    %c65 = arith.constant 65 : index
    %c0_5 = arith.constant 0 : index
    %5 = vector.load %arg1[%c65, %c0_5] : memref<72x16xf32, #tpu.memory_space<vmem>>, vector<1x16xf32>
    %c66 = arith.constant 66 : index
    %c0_6 = arith.constant 0 : index
    %6 = vector.load %arg1[%c66, %c0_6] : memref<72x16xf32, #tpu.memory_space<vmem>>, vector<1x8xf32>
    %c67 = arith.constant 67 : index
    %c0_7 = arith.constant 0 : index
    %7 = vector.load %arg1[%c67, %c0_7] : memref<72x16xf32, #tpu.memory_space<vmem>>, vector<1x8xf32>
    %c68 = arith.constant 68 : index
    %c0_8 = arith.constant 0 : index
    %8 = vector.load %arg1[%c68, %c0_8] : memref<72x16xf32, #tpu.memory_space<vmem>>, vector<1x4xf32>
    %c69 = arith.constant 69 : index
    %c0_9 = arith.constant 0 : index
    %9 = vector.load %arg1[%c69, %c0_9] : memref<72x16xf32, #tpu.memory_space<vmem>>, vector<1x4xf32>
    %c70 = arith.constant 70 : index
    %c0_10 = arith.constant 0 : index
    %10 = vector.load %arg1[%c70, %c0_10] : memref<72x16xf32, #tpu.memory_space<vmem>>, vector<1x8xf32>
    %c0_11 = arith.constant 0 : index
    %c0_12 = arith.constant 0 : index
    %11 = vector.load %arg0[%c0_11, %c0_12] : memref<16x64xf32, #tpu.memory_space<vmem>>, vector<16x64xf32>
    %12 = vector.extract_strided_slice %11 {offsets = [0, 0], sizes = [16, 32], strides = [1, 1]} : vector<16x64xf32> to vector<16x32xf32>
    %13 = vector.extract_strided_slice %11 {offsets = [0, 32], sizes = [16, 32], strides = [1, 1]} : vector<16x64xf32> to vector<16x32xf32>
    %14 = tpu.concatenate %12, %13 in 0 : vector<16x32xf32>, vector<16x32xf32> -> vector<32x32xf32>
    %15 = tpu.iota {dimensions = array<i32: 0>} : vector<32x1xi32>
    %c16_i32 = arith.constant 16 : i32
    %16 = vector.broadcast %c16_i32 : i32 to vector<32x1xi32>
    %17 = arith.cmpi slt, %15, %16 : vector<32x1xi32>
    %cst = arith.constant dense<0.000000e+00> : vector<32x16xf32>
    %18 = tpu.matmul %14, %0, %cst {dimension_numbers = #tpu.dot_dimension_numbers<[1], [0], [0], [1], [0, 0, 1, 1], [], []>} : vector<32x32xf32>, vector<32x16xf32>, vector<32x16xf32> -> vector<32x16xf32>
    %19 = vector.extract_strided_slice %18 {offsets = [0, 0], sizes = [16, 16], strides = [1, 1]} : vector<32x16xf32> to vector<16x16xf32>
    %20 = vector.extract_strided_slice %18 {offsets = [16, 0], sizes = [16, 16], strides = [1, 1]} : vector<32x16xf32> to vector<16x16xf32>
    %cst_13 = arith.constant dense<0.000000e+00> : vector<16xf32>
    %21 = vector.multi_reduction <add>, %19, %cst_13 [0] : vector<16x16xf32> to vector<16xf32>
    %22 = vector.shape_cast %21 : vector<16xf32> to vector<1x16xf32>
    %cst_14 = arith.constant 1.600000e+01 : f32
    %23 = vector.broadcast %cst_14 : f32 to vector<1x16xf32>
    %24 = arith.divf %22, %23 : vector<1x16xf32>
    %cst_15 = arith.constant dense<0.000000e+00> : vector<16xf32>
    %25 = vector.multi_reduction <add>, %20, %cst_15 [0] : vector<16x16xf32> to vector<16xf32>
    %26 = vector.shape_cast %25 : vector<16xf32> to vector<1x16xf32>
    %cst_16 = arith.constant 1.600000e+01 : f32
    %27 = vector.broadcast %cst_16 : f32 to vector<1x16xf32>
    %28 = arith.divf %26, %27 : vector<1x16xf32>
    %29 = arith.mulf %19, %19 : vector<16x16xf32>
    %cst_17 = arith.constant dense<0.000000e+00> : vector<16xf32>
    %30 = vector.multi_reduction <add>, %29, %cst_17 [0] : vector<16x16xf32> to vector<16xf32>
    %31 = vector.shape_cast %30 : vector<16xf32> to vector<1x16xf32>
    %cst_18 = arith.constant 1.600000e+01 : f32
    %32 = vector.broadcast %cst_18 : f32 to vector<1x16xf32>
    %33 = arith.divf %31, %32 : vector<1x16xf32>
    %34 = arith.mulf %20, %20 : vector<16x16xf32>
    %cst_19 = arith.constant dense<0.000000e+00> : vector<16xf32>
    %35 = vector.multi_reduction <add>, %34, %cst_19 [0] : vector<16x16xf32> to vector<16xf32>
    %36 = vector.shape_cast %35 : vector<16xf32> to vector<1x16xf32>
    %cst_20 = arith.constant 1.600000e+01 : f32
    %37 = vector.broadcast %cst_20 : f32 to vector<1x16xf32>
    %38 = arith.divf %36, %37 : vector<1x16xf32>
    %39 = vector.shape_cast %17 : vector<32x1xi1> to vector<32x1xi1>
    %40 = vector.broadcast %39 : vector<32x1xi1> to vector<32x16xi1>
    %41 = vector.shape_cast %24 : vector<1x16xf32> to vector<1x16xf32>
    %42 = vector.broadcast %41 : vector<1x16xf32> to vector<32x16xf32>
    %43 = vector.shape_cast %28 : vector<1x16xf32> to vector<1x16xf32>
    %44 = vector.broadcast %43 : vector<1x16xf32> to vector<32x16xf32>
    %45 = arith.select %40, %42, %44 : vector<32x16xi1>, vector<32x16xf32>
    %46 = vector.shape_cast %17 : vector<32x1xi1> to vector<32x1xi1>
    %47 = vector.broadcast %46 : vector<32x1xi1> to vector<32x16xi1>
    %48 = vector.shape_cast %33 : vector<1x16xf32> to vector<1x16xf32>
    %49 = vector.broadcast %48 : vector<1x16xf32> to vector<32x16xf32>
    %50 = vector.shape_cast %38 : vector<1x16xf32> to vector<1x16xf32>
    %51 = vector.broadcast %50 : vector<1x16xf32> to vector<32x16xf32>
    %52 = arith.select %47, %49, %51 : vector<32x16xi1>, vector<32x16xf32>
    %53 = arith.mulf %45, %45 : vector<32x16xf32>
    %54 = arith.subf %52, %53 : vector<32x16xf32>
    %55 = arith.subf %18, %45 : vector<32x16xf32>
    %cst_21 = arith.constant 9.99999974E-6 : f32
    %56 = vector.broadcast %cst_21 : f32 to vector<32x16xf32>
    %57 = arith.addf %54, %56 : vector<32x16xf32>
    %58 = math.rsqrt %57 : vector<32x16xf32>
    %59 = arith.mulf %55, %58 : vector<32x16xf32>
    %60 = vector.broadcast %4 : vector<1x16xf32> to vector<32x16xf32>
    %61 = arith.mulf %59, %60 : vector<32x16xf32>
    %62 = vector.broadcast %5 : vector<1x16xf32> to vector<32x16xf32>
    %63 = arith.addf %61, %62 : vector<32x16xf32>
    %cst_22 = arith.constant 0.000000e+00 : f32
    %64 = vector.broadcast %cst_22 : f32 to vector<32x16xf32>
    %65 = arith.maximumf %63, %64 : vector<32x16xf32>
    %cst_23 = arith.constant dense<0.000000e+00> : vector<32x8xf32>
    %66 = tpu.matmul %65, %1, %cst_23 {dimension_numbers = #tpu.dot_dimension_numbers<[1], [0], [0], [1], [0, 0, 1, 1], [], []>} : vector<32x16xf32>, vector<16x8xf32>, vector<32x8xf32> -> vector<32x8xf32>
    %67 = vector.extract_strided_slice %66 {offsets = [0, 0], sizes = [16, 8], strides = [1, 1]} : vector<32x8xf32> to vector<16x8xf32>
    %68 = vector.extract_strided_slice %66 {offsets = [16, 0], sizes = [16, 8], strides = [1, 1]} : vector<32x8xf32> to vector<16x8xf32>
    %cst_24 = arith.constant dense<0.000000e+00> : vector<8xf32>
    %69 = vector.multi_reduction <add>, %67, %cst_24 [0] : vector<16x8xf32> to vector<8xf32>
    %70 = vector.shape_cast %69 : vector<8xf32> to vector<1x8xf32>
    %cst_25 = arith.constant 1.600000e+01 : f32
    %71 = vector.broadcast %cst_25 : f32 to vector<1x8xf32>
    %72 = arith.divf %70, %71 : vector<1x8xf32>
    %cst_26 = arith.constant dense<0.000000e+00> : vector<8xf32>
    %73 = vector.multi_reduction <add>, %68, %cst_26 [0] : vector<16x8xf32> to vector<8xf32>
    %74 = vector.shape_cast %73 : vector<8xf32> to vector<1x8xf32>
    %cst_27 = arith.constant 1.600000e+01 : f32
    %75 = vector.broadcast %cst_27 : f32 to vector<1x8xf32>
    %76 = arith.divf %74, %75 : vector<1x8xf32>
    %77 = arith.mulf %67, %67 : vector<16x8xf32>
    %cst_28 = arith.constant dense<0.000000e+00> : vector<8xf32>
    %78 = vector.multi_reduction <add>, %77, %cst_28 [0] : vector<16x8xf32> to vector<8xf32>
    %79 = vector.shape_cast %78 : vector<8xf32> to vector<1x8xf32>
    %cst_29 = arith.constant 1.600000e+01 : f32
    %80 = vector.broadcast %cst_29 : f32 to vector<1x8xf32>
    %81 = arith.divf %79, %80 : vector<1x8xf32>
    %82 = arith.mulf %68, %68 : vector<16x8xf32>
    %cst_30 = arith.constant dense<0.000000e+00> : vector<8xf32>
    %83 = vector.multi_reduction <add>, %82, %cst_30 [0] : vector<16x8xf32> to vector<8xf32>
    %84 = vector.shape_cast %83 : vector<8xf32> to vector<1x8xf32>
    %cst_31 = arith.constant 1.600000e+01 : f32
    %85 = vector.broadcast %cst_31 : f32 to vector<1x8xf32>
    %86 = arith.divf %84, %85 : vector<1x8xf32>
    %87 = vector.shape_cast %17 : vector<32x1xi1> to vector<32x1xi1>
    %88 = vector.broadcast %87 : vector<32x1xi1> to vector<32x8xi1>
    %89 = vector.shape_cast %72 : vector<1x8xf32> to vector<1x8xf32>
    %90 = vector.broadcast %89 : vector<1x8xf32> to vector<32x8xf32>
    %91 = vector.shape_cast %76 : vector<1x8xf32> to vector<1x8xf32>
    %92 = vector.broadcast %91 : vector<1x8xf32> to vector<32x8xf32>
    %93 = arith.select %88, %90, %92 : vector<32x8xi1>, vector<32x8xf32>
    %94 = vector.shape_cast %17 : vector<32x1xi1> to vector<32x1xi1>
    %95 = vector.broadcast %94 : vector<32x1xi1> to vector<32x8xi1>
    %96 = vector.shape_cast %81 : vector<1x8xf32> to vector<1x8xf32>
    %97 = vector.broadcast %96 : vector<1x8xf32> to vector<32x8xf32>
    %98 = vector.shape_cast %86 : vector<1x8xf32> to vector<1x8xf32>
    %99 = vector.broadcast %98 : vector<1x8xf32> to vector<32x8xf32>
    %100 = arith.select %95, %97, %99 : vector<32x8xi1>, vector<32x8xf32>
    %101 = arith.mulf %93, %93 : vector<32x8xf32>
    %102 = arith.subf %100, %101 : vector<32x8xf32>
    %103 = arith.subf %66, %93 : vector<32x8xf32>
    %cst_32 = arith.constant 9.99999974E-6 : f32
    %104 = vector.broadcast %cst_32 : f32 to vector<32x8xf32>
    %105 = arith.addf %102, %104 : vector<32x8xf32>
    %106 = math.rsqrt %105 : vector<32x8xf32>
    %107 = arith.mulf %103, %106 : vector<32x8xf32>
    %108 = vector.broadcast %6 : vector<1x8xf32> to vector<32x8xf32>
    %109 = arith.mulf %107, %108 : vector<32x8xf32>
    %110 = vector.broadcast %7 : vector<1x8xf32> to vector<32x8xf32>
    %111 = arith.addf %109, %110 : vector<32x8xf32>
    %cst_33 = arith.constant 0.000000e+00 : f32
    %112 = vector.broadcast %cst_33 : f32 to vector<32x8xf32>
    %113 = arith.maximumf %111, %112 : vector<32x8xf32>
    %114 = vector.extract_strided_slice %113 {offsets = [0, 0], sizes = [16, 8], strides = [1, 1]} : vector<32x8xf32> to vector<16x8xf32>
    %115 = vector.extract_strided_slice %113 {offsets = [16, 0], sizes = [16, 8], strides = [1, 1]} : vector<32x8xf32> to vector<16x8xf32>
    %cst_34 = arith.constant dense<0.000000e+00> : vector<8xf32>
    %116 = vector.multi_reduction <add>, %114, %cst_34 [0] : vector<16x8xf32> to vector<8xf32>
    %117 = vector.shape_cast %116 : vector<8xf32> to vector<1x8xf32>
    %cst_35 = arith.constant 1.600000e+01 : f32
    %118 = vector.broadcast %cst_35 : f32 to vector<1x8xf32>
    %119 = arith.divf %117, %118 : vector<1x8xf32>
    %cst_36 = arith.constant dense<0.000000e+00> : vector<8xf32>
    %120 = vector.multi_reduction <add>, %115, %cst_36 [0] : vector<16x8xf32> to vector<8xf32>
    %121 = vector.shape_cast %120 : vector<8xf32> to vector<1x8xf32>
    %cst_37 = arith.constant 1.600000e+01 : f32
    %122 = vector.broadcast %cst_37 : f32 to vector<1x8xf32>
    %123 = arith.divf %121, %122 : vector<1x8xf32>
    %124 = arith.mulf %114, %114 : vector<16x8xf32>
    %cst_38 = arith.constant dense<0.000000e+00> : vector<8xf32>
    %125 = vector.multi_reduction <add>, %124, %cst_38 [0] : vector<16x8xf32> to vector<8xf32>
    %126 = vector.shape_cast %125 : vector<8xf32> to vector<1x8xf32>
    %cst_39 = arith.constant 1.600000e+01 : f32
    %127 = vector.broadcast %cst_39 : f32 to vector<1x8xf32>
    %128 = arith.divf %126, %127 : vector<1x8xf32>
    %129 = arith.mulf %115, %115 : vector<16x8xf32>
    %cst_40 = arith.constant dense<0.000000e+00> : vector<8xf32>
    %130 = vector.multi_reduction <add>, %129, %cst_40 [0] : vector<16x8xf32> to vector<8xf32>
    %131 = vector.shape_cast %130 : vector<8xf32> to vector<1x8xf32>
    %cst_41 = arith.constant 1.600000e+01 : f32
    %132 = vector.broadcast %cst_41 : f32 to vector<1x8xf32>
    %133 = arith.divf %131, %132 : vector<1x8xf32>
    %134 = vector.shape_cast %17 : vector<32x1xi1> to vector<32x1xi1>
    %135 = vector.broadcast %134 : vector<32x1xi1> to vector<32x8xi1>
    %136 = vector.shape_cast %119 : vector<1x8xf32> to vector<1x8xf32>
    %137 = vector.broadcast %136 : vector<1x8xf32> to vector<32x8xf32>
    %138 = vector.shape_cast %123 : vector<1x8xf32> to vector<1x8xf32>
    %139 = vector.broadcast %138 : vector<1x8xf32> to vector<32x8xf32>
    %140 = arith.select %135, %137, %139 : vector<32x8xi1>, vector<32x8xf32>
    %141 = vector.shape_cast %17 : vector<32x1xi1> to vector<32x1xi1>
    %142 = vector.broadcast %141 : vector<32x1xi1> to vector<32x8xi1>
    %143 = vector.shape_cast %128 : vector<1x8xf32> to vector<1x8xf32>
    %144 = vector.broadcast %143 : vector<1x8xf32> to vector<32x8xf32>
    %145 = vector.shape_cast %133 : vector<1x8xf32> to vector<1x8xf32>
    %146 = vector.broadcast %145 : vector<1x8xf32> to vector<32x8xf32>
    %147 = arith.select %142, %144, %146 : vector<32x8xi1>, vector<32x8xf32>
    %148 = arith.mulf %140, %140 : vector<32x8xf32>
    %149 = arith.subf %147, %148 : vector<32x8xf32>
    %150 = arith.subf %113, %140 : vector<32x8xf32>
    %cst_42 = arith.constant 9.99999974E-6 : f32
    %151 = vector.broadcast %cst_42 : f32 to vector<32x8xf32>
    %152 = arith.addf %149, %151 : vector<32x8xf32>
    %153 = math.rsqrt %152 : vector<32x8xf32>
    %154 = arith.mulf %150, %153 : vector<32x8xf32>
    %cst_43 = arith.constant dense<0.000000e+00> : vector<32x4xf32>
    %155 = tpu.matmul %154, %2, %cst_43 {dimension_numbers = #tpu.dot_dimension_numbers<[1], [0], [0], [1], [0, 0, 1, 1], [], []>} : vector<32x8xf32>, vector<8x4xf32>, vector<32x4xf32> -> vector<32x4xf32>
    %156 = vector.extract_strided_slice %155 {offsets = [0, 0], sizes = [16, 4], strides = [1, 1]} : vector<32x4xf32> to vector<16x4xf32>
    %157 = vector.extract_strided_slice %155 {offsets = [16, 0], sizes = [16, 4], strides = [1, 1]} : vector<32x4xf32> to vector<16x4xf32>
    %cst_44 = arith.constant dense<0.000000e+00> : vector<4xf32>
    %158 = vector.multi_reduction <add>, %156, %cst_44 [0] : vector<16x4xf32> to vector<4xf32>
    %159 = vector.shape_cast %158 : vector<4xf32> to vector<1x4xf32>
    %cst_45 = arith.constant 1.600000e+01 : f32
    %160 = vector.broadcast %cst_45 : f32 to vector<1x4xf32>
    %161 = arith.divf %159, %160 : vector<1x4xf32>
    %cst_46 = arith.constant dense<0.000000e+00> : vector<4xf32>
    %162 = vector.multi_reduction <add>, %157, %cst_46 [0] : vector<16x4xf32> to vector<4xf32>
    %163 = vector.shape_cast %162 : vector<4xf32> to vector<1x4xf32>
    %cst_47 = arith.constant 1.600000e+01 : f32
    %164 = vector.broadcast %cst_47 : f32 to vector<1x4xf32>
    %165 = arith.divf %163, %164 : vector<1x4xf32>
    %166 = arith.mulf %156, %156 : vector<16x4xf32>
    %cst_48 = arith.constant dense<0.000000e+00> : vector<4xf32>
    %167 = vector.multi_reduction <add>, %166, %cst_48 [0] : vector<16x4xf32> to vector<4xf32>
    %168 = vector.shape_cast %167 : vector<4xf32> to vector<1x4xf32>
    %cst_49 = arith.constant 1.600000e+01 : f32
    %169 = vector.broadcast %cst_49 : f32 to vector<1x4xf32>
    %170 = arith.divf %168, %169 : vector<1x4xf32>
    %171 = arith.mulf %157, %157 : vector<16x4xf32>
    %cst_50 = arith.constant dense<0.000000e+00> : vector<4xf32>
    %172 = vector.multi_reduction <add>, %171, %cst_50 [0] : vector<16x4xf32> to vector<4xf32>
    %173 = vector.shape_cast %172 : vector<4xf32> to vector<1x4xf32>
    %cst_51 = arith.constant 1.600000e+01 : f32
    %174 = vector.broadcast %cst_51 : f32 to vector<1x4xf32>
    %175 = arith.divf %173, %174 : vector<1x4xf32>
    %176 = vector.shape_cast %17 : vector<32x1xi1> to vector<32x1xi1>
    %177 = vector.broadcast %176 : vector<32x1xi1> to vector<32x4xi1>
    %178 = vector.shape_cast %161 : vector<1x4xf32> to vector<1x4xf32>
    %179 = vector.broadcast %178 : vector<1x4xf32> to vector<32x4xf32>
    %180 = vector.shape_cast %165 : vector<1x4xf32> to vector<1x4xf32>
    %181 = vector.broadcast %180 : vector<1x4xf32> to vector<32x4xf32>
    %182 = arith.select %177, %179, %181 : vector<32x4xi1>, vector<32x4xf32>
    %183 = vector.shape_cast %17 : vector<32x1xi1> to vector<32x1xi1>
    %184 = vector.broadcast %183 : vector<32x1xi1> to vector<32x4xi1>
    %185 = vector.shape_cast %170 : vector<1x4xf32> to vector<1x4xf32>
    %186 = vector.broadcast %185 : vector<1x4xf32> to vector<32x4xf32>
    %187 = vector.shape_cast %175 : vector<1x4xf32> to vector<1x4xf32>
    %188 = vector.broadcast %187 : vector<1x4xf32> to vector<32x4xf32>
    %189 = arith.select %184, %186, %188 : vector<32x4xi1>, vector<32x4xf32>
    %190 = arith.mulf %182, %182 : vector<32x4xf32>
    %191 = arith.subf %189, %190 : vector<32x4xf32>
    %192 = arith.subf %155, %182 : vector<32x4xf32>
    %cst_52 = arith.constant 9.99999974E-6 : f32
    %193 = vector.broadcast %cst_52 : f32 to vector<32x4xf32>
    %194 = arith.addf %191, %193 : vector<32x4xf32>
    %195 = math.rsqrt %194 : vector<32x4xf32>
    %196 = arith.mulf %192, %195 : vector<32x4xf32>
    %197 = vector.broadcast %8 : vector<1x4xf32> to vector<32x4xf32>
    %198 = arith.mulf %196, %197 : vector<32x4xf32>
    %199 = vector.broadcast %9 : vector<1x4xf32> to vector<32x4xf32>
    %200 = arith.addf %198, %199 : vector<32x4xf32>
    %cst_53 = arith.constant 0.000000e+00 : f32
    %201 = vector.broadcast %cst_53 : f32 to vector<32x4xf32>
    %202 = arith.maximumf %200, %201 : vector<32x4xf32>
    %cst_54 = arith.constant dense<0.000000e+00> : vector<32x8xf32>
    %203 = tpu.matmul %202, %3, %cst_54 {dimension_numbers = #tpu.dot_dimension_numbers<[1], [0], [0], [1], [0, 0, 1, 1], [], []>} : vector<32x4xf32>, vector<4x8xf32>, vector<32x8xf32> -> vector<32x8xf32>
    %204 = vector.broadcast %10 : vector<1x8xf32> to vector<32x8xf32>
    %205 = arith.addf %203, %204 : vector<32x8xf32>
    %206 = vector.extract_strided_slice %205 {offsets = [0, 0], sizes = [16, 8], strides = [1, 1]} : vector<32x8xf32> to vector<16x8xf32>
    %c0_55 = arith.constant 0 : index
    %c0_56 = arith.constant 0 : index
    %207 = vector.load %arg2[%c0_55, %c0_56] : memref<16x32xf32, #tpu.memory_space<vmem>>, vector<16x8xf32>
    tpu.vector_store %arg2[%c0_55, %c0_56], %206 {strides = array<i32>} : memref<16x32xf32, #tpu.memory_space<vmem>>, vector<16x8xf32>,
    %208 = vector.extract_strided_slice %205 {offsets = [16, 0], sizes = [16, 8], strides = [1, 1]} : vector<32x8xf32> to vector<16x8xf32>
    %c0_57 = arith.constant 0 : index
    %c8 = arith.constant 8 : index
    %209 = vector.load %arg2[%c0_57, %c8] : memref<16x32xf32, #tpu.memory_space<vmem>>, vector<16x8xf32>
    tpu.vector_store %arg2[%c0_57, %c8], %208 {strides = array<i32>} : memref<16x32xf32, #tpu.memory_space<vmem>>, vector<16x8xf32>,
    %210 = vector.extract_strided_slice %154 {offsets = [0, 0], sizes = [16, 8], strides = [1, 1]} : vector<32x8xf32> to vector<16x8xf32>
    %c0_58 = arith.constant 0 : index
    %c16 = arith.constant 16 : index
    %211 = vector.load %arg2[%c0_58, %c16] : memref<16x32xf32, #tpu.memory_space<vmem>>, vector<16x8xf32>
    tpu.vector_store %arg2[%c0_58, %c16], %210 {strides = array<i32>} : memref<16x32xf32, #tpu.memory_space<vmem>>, vector<16x8xf32>,
    %212 = vector.extract_strided_slice %154 {offsets = [16, 0], sizes = [16, 8], strides = [1, 1]} : vector<32x8xf32> to vector<16x8xf32>
    %c0_59 = arith.constant 0 : index
    %c24 = arith.constant 24 : index
    %213 = vector.load %arg2[%c0_59, %c24] : memref<16x32xf32, #tpu.memory_space<vmem>>, vector<16x8xf32>
    tpu.vector_store %arg2[%c0_59, %c24], %212 {strides = array<i32>} : memref<16x32xf32, #tpu.memory_space<vmem>>, vector<16x8xf32>,
    return
  }
}

</mosaic_0001>

<llo_original>
// kernel: custom_siam_forward.1
$region0: #{custom_siam_forward.1}
  #allocation0 [shape = 'u32[]', space=smem, size = 0x4, offset = 0x4, fixed_abs, tag = 'smem constant byte address 0x4 - core index']
  #allocation1 [shape = 'u32[144,128]{1,0:T(1,128)}', space=vmem, size = 0x12000, scoped, tag = 'internal scratch']
  %s0 = inlined_call_operand.vmem [shape: f32[16,64], index: 0, kind: input, shape index: {}]
  %s1 = inlined_call_operand.vmem [shape: f32[72,16], index: 1, kind: input, shape index: {}]
  %s2 = inlined_call_operand.hbm [shape: f32[16,32], index: 2, kind: output, shape index: {}]
  %s3 = sld [smem:[#allocation0]]
  $region18: #{custom_siam_forward.1} parent=0
    _
  %s5 = ssub.s32 1, %s3
  %s6 = scalar_select 0, %s5, %s3
  $region1: #{custom_siam_forward.1} parent=0
    #allocation2 [shape = 'u8[8192]{0}', space=vmem, size = 0x2000, scoped, tag = 'output window, operand 0, single buffered']
    #allocation3 [shape = 's32[1]{0}', space=sflag, size = 0x4, scoped, tag = 'scoped memory for custom_siam_forward.1']
    %7 = vsyncpa [#allocation3], 0
    // Predicated region
    $region2: #{custom_siam_forward.1} parent=1 // pred_check
      _
    $region3: #{custom_siam_forward.1} parent=1 // pred_check_branch
      %9 = sbr.rel (0) target = $region5
    $region4: #{custom_siam_forward.1} parent=1 // pred_region
      _
    $region5: #{custom_siam_forward.1} parent=1 // pred_fallthru
      _
    // Predicated region
    $region6: #{custom_siam_forward.1} parent=1 // pred_check
      _
    $region7: #{custom_siam_forward.1} parent=1 // pred_check_branch
      %11 = sbr.rel (0) target = $region9
    $region8: #{custom_siam_forward.1} parent=1 // pred_region
      _
    $region9: #{custom_siam_forward.1} parent=1 // pred_fallthru
      _
    %v12 = vld [vmem:[%s1] sm:$0xff]
    %v13 = vld [vmem:[%s1 + $0x8] sm:$0xff]
    %v14 = vld [vmem:[%s1 + $0x10] sm:$0xff]
    %v15 = vld [vmem:[%s1 + $0x18] sm:$0xff]
    %v16 = vld [vmem:[%s1 + $0x20] sm:$0xff]
    %v17 = vld [vmem:[%s1 + $0x28] sm:$0xff]
    %v18 = vld [vmem:[%s1 + $0x30] sm:$0xff]
    %v19 = vld [vmem:[%s1 + $0x38] sm:$0xf]
    %v20 = vld [vmem:[%s1 + $0x40] sm:$0x1]
    %v21 = vld [vmem:[%s1 + $0x41] sm:$0x1]
    %v22 = vld [vmem:[%s1 + $0x42] sm:$0x1]
    %v23 = vld [vmem:[%s1 + $0x43] sm:$0x1]
    %v24 = vld [vmem:[%s1 + $0x44] sm:$0x1]
    %v25 = vld [vmem:[%s1 + $0x45] sm:$0x1]
    %v26 = vld [vmem:[%s1 + $0x46] sm:$0x1]
    %v27 = vld [vmem:[%s0] sm:$0xff]
    %v28 = vld [vmem:[%s0 + $0x8] sm:$0xff]
    %31 = vrot.lane.b32.xlu0 %v27, 96
    %v32 = vpop.permute.xlu0 %31
    %33 = vrot.lane.b32.xlu0 %v28, 96
    %v34 = vpop.permute.xlu0 %33
    %v35 = vlaneseq
    %v36 = vshrl.u32 %v35, 7
    %v37 = vadd.s32 %v36, 8
    %v38 = vadd.s32 %v36, 16
    %v39 = vadd.s32 %v36, 24
    %vm40 = vcmp.lt.s32.totalorder %v36, 16
    %vm41 = vcmp.lt.s32.totalorder %v37, 16
    %vm42 = vcmp.lt.s32.totalorder %v38, 16
    %vm43 = vcmp.lt.s32.totalorder %v39, 16
    %vm44 = vcmask 261120
    %v45 = vsel %vm44, %v27, 0
    %v47 = vsel %vm44, %v28, 0
    %v49 = vsel %vm44, %v32, 0
    %v51 = vsel %vm44, %v34, 0
    %53 = vmatprep.subr.mxu0 0.0
    %54 = vmatpush1.msra.mxu0 %v12
    %55 = vmatprep.subr.mxu0 0.0
    %56 = vmatpush1.msra.mxu0 %v13
    %57 = vmatprep.subr.mxu0 0.0
    %58 = vmatpush1.msra.mxu0 %v14
    %59 = vmatprep.subr.mxu0 0.0
    %60 = vmatpush1.msra.mxu0 %v15
    %61 = vmatprep.subr.mxu0 0.0
    %62 = vmatpush1.msra.mxu0 0.0
    %63 = vmatprep.subr.mxu0 0.0
    %64 = vmatpush1.msra.mxu0 0.0
    %65 = vmatprep.subr.mxu0 0.0
    %66 = vmatpush1.msra.mxu0 0.0
    %67 = vmatprep.subr.mxu0 0.0
    %68 = vmatpush1.msra.mxu0 0.0
    %69 = vmatprep.subr.mxu0 0.0
    %70 = vmatpush1.msra.mxu0 0.0
    %71 = vmatprep.subr.mxu0 0.0
    %72 = vmatpush1.msra.mxu0 0.0
    %73 = vmatprep.subr.mxu0 0.0
    %74 = vmatpush1.msra.mxu0 0.0
    %75 = vmatprep.subr.mxu0 0.0
    %76 = vmatpush1.msra.mxu0 0.0
    %77 = vmatprep.subr.mxu0 0.0
    %78 = vmatpush1.msra.mxu0 0.0
    %79 = vmatprep.subr.mxu0 0.0
    %80 = vmatpush1.msra.mxu0 0.0
    %81 = vmatprep.subr.mxu0 0.0
    %82 = vmatpush1.msra.mxu0 0.0
    %83 = vmatprep.subr.mxu0 0.0
    %84 = vmatpush1.msra.mxu0 0.0
    %85 = vmatprep.subr.mxu0 0.0
    %86 = vmatpush1.msra.mxu0 0.0
    %87 = vmatprep.subr.mxu0 0.0
    %88 = vmatpush1.msra.mxu0 0.0
    %89 = vmatprep.subr.mxu0 0.0
    %90 = vmatpush1.msra.mxu0 0.0
    %91 = vmatprep.subr.mxu0 0.0
    %92 = vmatpush1.msra.mxu0 0.0
    %93 = vmatprep.subr.mxu0 0.0
    %94 = vmatpush1.msra.mxu0 0.0
    %95 = vmatprep.subr.mxu0 0.0
    %96 = vmatpush1.msra.mxu0 0.0
    %97 = vmatprep.subr.mxu0 0.0
    %98 = vmatpush1.msra.mxu0 0.0
    %99 = vmatprep.subr.mxu0 0.0
    %100 = vmatpush1.msra.mxu0 0.0
    %101 = vmatprep.subr.mxu0 0.0
    %102 = vmatpush1.msra.mxu0 0.0
    %103 = vmatprep.subr.mxu0 0.0
    %104 = vmatpush1.msra.mxu0 0.0
    %105 = vmatprep.subr.mxu0 0.0
    %106 = vmatpush1.msra.mxu0 0.0
    %107 = vmatprep.subr.mxu0 0.0
    %108 = vmatpush1.msra.mxu0 0.0
    %109 = vmatprep.subr.mxu0 0.0
    %110 = vmatpush1.msra.mxu0 0.0
    %111 = vmatprep.subr.mxu0 0.0
    %112 = vmatpush1.msra.mxu0 0.0
    %113 = vmatprep.subr.mxu0 0.0
    %114 = vmatpush1.msra.mxu0 0.0
    %115 = vmatprep.subr.mxu0 0.0
    %116 = vmatpush1.msra.mxu0 0.0
    %117 = vmatprep.mubr.f32.mxu0 0.0
    %118 = vmatmul.mubr.f32.gmra.mrb[0].mxu0 %v45
    %v119 = vpop.f32.mrb[0].mxu0
    %v120 = vadd.f32 0.0, %v119
    %v121 = vpop.f32.mrb[0].mxu0
    %122 = vmatprep.mubr.f32.mxu0 0.0
    %123 = vmatmul.mubr.f32.gmra.mrb[0].mxu0 %v47
    %v124 = vpop.f32.mrb[0].mxu0
    %v125 = vadd.f32 0.0, %v124
    %v126 = vpop.f32.mrb[0].mxu0
    %127 = vmatprep.mubr.f32.mxu0 0.0
    %128 = vmatmul.mubr.f32.gmra.mrb[0].mxu0 %v49
    %v129 = vpop.f32.mrb[0].mxu0
    %v130 = vadd.f32 0.0, %v129
    %v131 = vpop.f32.mrb[0].mxu0
    %132 = vmatprep.mubr.f32.mxu0 0.0
    %133 = vmatmul.mubr.f32.gmra.mrb[0].mxu0 %v51
    %v134 = vpop.f32.mrb[0].mxu0
    %v135 = vadd.f32 0.0, %v134
    %v136 = vpop.f32.mrb[0].mxu0
    %137 = vdwg.mxu0
    %vm138 = vcmask 130048
    %v139 = vsel %vm138, %v120, 0.0
    %v140 = vsel %vm138, %v125, 0.0
    %v141 = vadd.f32 %v139, %v140
    %v142 = vrot.slane %v141, 4
    %v143 = vadd.f32 %v141, %v142
    %v144 = vrot.slane %v143, 2
    %v145 = vadd.f32 %v143, %v144
    %v146 = vrot.slane %v145, 1
    %v147 = vadd.f32 %v145, %v146
    %v148 = vrcp.pop 16.0
    %v149 = vmul.f32 %v147, %v148
    %v150 = vsel %vm138, %v130, 0.0
    %v151 = vsel %vm138, %v135, 0.0
    %v152 = vadd.f32 %v150, %v151
    %v153 = vrot.slane %v152, 4
    %v154 = vadd.f32 %v152, %v153
    %v155 = vrot.slane %v154, 2
    %v156 = vadd.f32 %v154, %v155
    %v157 = vrot.slane %v156, 1
    %v158 = vadd.f32 %v156, %v157
    %v159 = vmul.f32 %v158, %v148
    %v160 = vmul.f32 %v120, %v120
    %v161 = vmul.f32 %v125, %v125
    %v162 = vsel %vm138, %v160, 0.0
    %v163 = vsel %vm138, %v161, 0.0
    %v164 = vadd.f32 %v162, %v163
    %v165 = vrot.slane %v164, 4
    %v166 = vadd.f32 %v164, %v165
    %v167 = vrot.slane %v166, 2
    %v168 = vadd.f32 %v166, %v167
    %v169 = vrot.slane %v168, 1
    %v170 = vadd.f32 %v168, %v169
    %v171 = vmul.f32 %v170, %v148
    %v172 = vmul.f32 %v130, %v130
    %v173 = vmul.f32 %v135, %v135
    %v174 = vsel %vm138, %v172, 0.0
    %v175 = vsel %vm138, %v173, 0.0
    %v176 = vadd.f32 %v174, %v175
    %v177 = vrot.slane %v176, 4
    %v178 = vadd.f32 %v176, %v177
    %v179 = vrot.slane %v178, 2
    %v180 = vadd.f32 %v178, %v179
    %v181 = vrot.slane %v180, 1
    %v182 = vadd.f32 %v180, %v181
    %v183 = vmul.f32 %v182, %v148
    %v184 = vsel %vm40, 1, 0
    %v185 = vsel %vm41, 1, 0
    %v186 = vsel %vm42, 1, 0
    %v187 = vsel %vm43, 1, 0
    %vm188 = vcmp.eq.s32.totalorder %v184, 1
    %vm189 = vcmp.eq.s32.totalorder %v185, 1
    %vm190 = vcmp.eq.s32.totalorder %v186, 1
    %vm191 = vcmp.eq.s32.totalorder %v187, 1
    %v192 = vsel %vm188, %v149, %v159
    %v193 = vsel %vm189, %v149, %v159
    %v194 = vsel %vm190, %v149, %v159
    %v195 = vsel %vm191, %v149, %v159
    %v196 = vsel %vm188, %v171, %v183
    %v197 = vsel %vm189, %v171, %v183
    %v198 = vsel %vm190, %v171, %v183
    %v199 = vsel %vm191, %v171, %v183
    %v200 = vmul.f32 %v192, %v192
    %v201 = vmul.f32 %v193, %v193
    %v202 = vmul.f32 %v194, %v194
    %v203 = vmul.f32 %v195, %v195
    %v204 = vsub.f32 %v196, %v200
    %v205 = vsub.f32 %v197, %v201
    %v206 = vsub.f32 %v198, %v202
    %v207 = vsub.f32 %v199, %v203
    %v208 = vsub.f32 %v120, %v192
    %v209 = vsub.f32 %v125, %v193
    %v210 = vsub.f32 %v130, %v194
    %v211 = vsub.f32 %v135, %v195
    %v212 = vadd.f32 %v204, 1e-05
    %v213 = vadd.f32 %v205, 1e-05
    %v214 = vadd.f32 %v206, 1e-05
    %v215 = vadd.f32 %v207, 1e-05
    %v216 = vrsqrt.pop %v212
    %v217 = vrsqrt.pop %v213
    %v218 = vrsqrt.pop %v214
    %v219 = vrsqrt.pop %v215
    %v220 = vmul.f32 %v208, %v216
    %v221 = vmul.f32 %v209, %v217
    %v222 = vmul.f32 %v210, %v218
    %v223 = vmul.f32 %v211, %v219
    %v224 = vlaneseq
    %v225 = vshrl.u32 %v224, 7
    %v226 = vsub.s32 0, %v225
    %v227 = vrot.slane %v20, %v226
    %v228 = vmul.f32 %v220, %v227
    %v229 = vmul.f32 %v221, %v227
    %v230 = vmul.f32 %v222, %v227
    %v231 = vmul.f32 %v223, %v227
    %v232 = vlaneseq
    %v233 = vshrl.u32 %v232, 7
    %v234 = vsub.s32 0, %v233
    %v235 = vrot.slane %v21, %v234
    %v236 = vadd.f32 %v228, %v235
    %v237 = vadd.f32 %v229, %v235
    %v238 = vadd.f32 %v230, %v235
    %v239 = vadd.f32 %v231, %v235
    %v240 = vmax.f32 %v236, 0.0
    %v241 = vmax.f32 %v237, 0.0
    %v242 = vmax.f32 %v238, 0.0
    %v243 = vmax.f32 %v239, 0.0
    %v245 = vsel %vm138, %v240, 0
    %v248 = vsel %vm138, %v241, 0
    %v251 = vsel %vm138, %v242, 0
    %v254 = vsel %vm138, %v243, 0
    %256 = vmatprep.subr.mxu0 0.0
    %257 = vmatpush1.msra.mxu0 %v16
    %258 = vmatprep.subr.mxu0 0.0
    %259 = vmatpush1.msra.mxu0 %v17
    %260 = vmatprep.subr.mxu0 0.0
    %261 = vmatpush1.msra.mxu0 0.0
    %262 = vmatprep.subr.mxu0 0.0
    %263 = vmatpush1.msra.mxu0 0.0
    %264 = vmatprep.subr.mxu0 0.0
    %265 = vmatpush1.msra.mxu0 0.0
    %266 = vmatprep.subr.mxu0 0.0
    %267 = vmatpush1.msra.mxu0 0.0
    %268 = vmatprep.subr.mxu0 0.0
    %269 = vmatpush1.msra.mxu0 0.0
    %270 = vmatprep.subr.mxu0 0.0
    %271 = vmatpush1.msra.mxu0 0.0
    %272 = vmatprep.subr.mxu0 0.0
    %273 = vmatpush1.msra.mxu0 0.0
    %274 = vmatprep.subr.mxu0 0.0
    %275 = vmatpush1.msra.mxu0 0.0
    %276 = vmatprep.subr.mxu0 0.0
    %277 = vmatpush1.msra.mxu0 0.0
    %278 = vmatprep.subr.mxu0 0.0
    %279 = vmatpush1.msra.mxu0 0.0
    %280 = vmatprep.subr.mxu0 0.0
    %281 = vmatpush1.msra.mxu0 0.0
    %282 = vmatprep.subr.mxu0 0.0
    %283 = vmatpush1.msra.mxu0 0.0
    %284 = vmatprep.subr.mxu0 0.0
    %285 = vmatpush1.msra.mxu0 0.0
    %286 = vmatprep.subr.mxu0 0.0
    %287 = vmatpush1.msra.mxu0 0.0
    %288 = vmatprep.subr.mxu0 0.0
    %289 = vmatpush1.msra.mxu0 0.0
    %290 = vmatprep.subr.mxu0 0.0
    %291 = vmatpush1.msra.mxu0 0.0
    %292 = vmatprep.subr.mxu0 0.0
    %293 = vmatpush1.msra.mxu0 0.0
    %294 = vmatprep.subr.mxu0 0.0
    %295 = vmatpush1.msra.mxu0 0.0
    %296 = vmatprep.subr.mxu0 0.0
    %297 = vmatpush1.msra.mxu0 0.0
    %298 = vmatprep.subr.mxu0 0.0
    %299 = vmatpush1.msra.mxu0 0.0
    %300 = vmatprep.subr.mxu0 0.0
    %301 = vmatpush1.msra.mxu0 0.0
    %302 = vmatprep.subr.mxu0 0.0
    %303 = vmatpush1.msra.mxu0 0.0
    %304 = vmatprep.subr.mxu0 0.0
    %305 = vmatpush1.msra.mxu0 0.0
    %306 = vmatprep.subr.mxu0 0.0
    %307 = vmatpush1.msra.mxu0 0.0
    %308 = vmatprep.subr.mxu0 0.0
    %309 = vmatpush1.msra.mxu0 0.0
    %310 = vmatprep.subr.mxu0 0.0
    %311 = vmatpush1.msra.mxu0 0.0
    %312 = vmatprep.subr.mxu0 0.0
    %313 = vmatpush1.msra.mxu0 0.0
    %314 = vmatprep.subr.mxu0 0.0
    %315 = vmatpush1.msra.mxu0 0.0
    %316 = vmatprep.subr.mxu0 0.0
    %317 = vmatpush1.msra.mxu0 0.0
    %318 = vmatprep.subr.mxu0 0.0
    %319 = vmatpush1.msra.mxu0 0.0
    %320 = vmatprep.mubr.f32.mxu0 0.0
    %321 = vmatmul.mubr.f32.gmra.mrb[0].mxu0 %v245
    %v322 = vpop.f32.mrb[0].mxu0
    %v323 = vadd.f32 0.0, %v322
    %v324 = vpop.f32.mrb[0].mxu0
    %325 = vmatprep.mubr.f32.mxu0 0.0
    %326 = vmatmul.mubr.f32.gmra.mrb[0].mxu0 %v248
    %v327 = vpop.f32.mrb[0].mxu0
    %v328 = vadd.f32 0.0, %v327
    %v329 = vpop.f32.mrb[0].mxu0
    %330 = vmatprep.mubr.f32.mxu0 0.0
    %331 = vmatmul.mubr.f32.gmra.mrb[0].mxu0 %v251
    %v332 = vpop.f32.mrb[0].mxu0
    %v333 = vadd.f32 0.0, %v332
    %v334 = vpop.f32.mrb[0].mxu0
    %335 = vmatprep.mubr.f32.mxu0 0.0
    %336 = vmatmul.mubr.f32.gmra.mrb[0].mxu0 %v254
    %v337 = vpop.f32.mrb[0].mxu0
    %v338 = vadd.f32 0.0, %v337
    %v339 = vpop.f32.mrb[0].mxu0
    %340 = vdwg.mxu0
    %vm341 = vcmask 64512
    %v342 = vsel %vm341, %v323, 0.0
    %v343 = vsel %vm341, %v328, 0.0
    %v344 = vadd.f32 %v342, %v343
    %v345 = vrot.slane %v344, 4
    %v346 = vadd.f32 %v344, %v345
    %v347 = vrot.slane %v346, 2
    %v348 = vadd.f32 %v346, %v347
    %v349 = vrot.slane %v348, 1
    %v350 = vadd.f32 %v348, %v349
    %v351 = vmul.f32 %v350, %v148
    %v352 = vsel %vm341, %v333, 0.0
    %v353 = vsel %vm341, %v338, 0.0
    %v354 = vadd.f32 %v352, %v353
    %v355 = vrot.slane %v354, 4
    %v356 = vadd.f32 %v354, %v355
    %v357 = vrot.slane %v356, 2
    %v358 = vadd.f32 %v356, %v357
    %v359 = vrot.slane %v358, 1
    %v360 = vadd.f32 %v358, %v359
    %v361 = vmul.f32 %v360, %v148
    %v362 = vmul.f32 %v323, %v323
    %v363 = vmul.f32 %v328, %v328
    %v364 = vsel %vm341, %v362, 0.0
    %v365 = vsel %vm341, %v363, 0.0
    %v366 = vadd.f32 %v364, %v365
    %v367 = vrot.slane %v366, 4
    %v368 = vadd.f32 %v366, %v367
    %v369 = vrot.slane %v368, 2
    %v370 = vadd.f32 %v368, %v369
    %v371 = vrot.slane %v370, 1
    %v372 = vadd.f32 %v370, %v371
    %v373 = vmul.f32 %v372, %v148
    %v374 = vmul.f32 %v333, %v333
    %v375 = vmul.f32 %v338, %v338
    %v376 = vsel %vm341, %v374, 0.0
    %v377 = vsel %vm341, %v375, 0.0
    %v378 = vadd.f32 %v376, %v377
    %v379 = vrot.slane %v378, 4
    %v380 = vadd.f32 %v378, %v379
    %v381 = vrot.slane %v380, 2
    %v382 = vadd.f32 %v380, %v381
    %v383 = vrot.slane %v382, 1
    %v384 = vadd.f32 %v382, %v383
    %v385 = vmul.f32 %v384, %v148
    %v386 = vsel %vm188, %v351, %v361
    %v387 = vsel %vm189, %v351, %v361
    %v388 = vsel %vm190, %v351, %v361
    %v389 = vsel %vm191, %v351, %v361
    %v390 = vsel %vm188, %v373, %v385
    %v391 = vsel %vm189, %v373, %v385
    %v392 = vsel %vm190, %v373, %v385
    %v393 = vsel %vm191, %v373, %v385
    %v394 = vmul.f32 %v386, %v386
    %v395 = vmul.f32 %v387, %v387
    %v396 = vmul.f32 %v388, %v388
    %v397 = vmul.f32 %v389, %v389
    %v398 = vsub.f32 %v390, %v394
    %v399 = vsub.f32 %v391, %v395
    %v400 = vsub.f32 %v392, %v396
    %v401 = vsub.f32 %v393, %v397
    %v402 = vsub.f32 %v323, %v386
    %v403 = vsub.f32 %v328, %v387
    %v404 = vsub.f32 %v333, %v388
    %v405 = vsub.f32 %v338, %v389
    %v406 = vadd.f32 %v398, 1e-05
    %v407 = vadd.f32 %v399, 1e-05
    %v408 = vadd.f32 %v400, 1e-05
    %v409 = vadd.f32 %v401, 1e-05
    %v410 = vrsqrt.pop %v406
    %v411 = vrsqrt.pop %v407
    %v412 = vrsqrt.pop %v408
    %v413 = vrsqrt.pop %v409
    %v414 = vmul.f32 %v402, %v410
    %v415 = vmul.f32 %v403, %v411
    %v416 = vmul.f32 %v404, %v412
    %v417 = vmul.f32 %v405, %v413
    %v418 = vlaneseq
    %v419 = vshrl.u32 %v418, 7
    %v420 = vsub.s32 0, %v419
    %v421 = vrot.slane %v22, %v420
    %v422 = vmul.f32 %v414, %v421
    %v423 = vmul.f32 %v415, %v421
    %v424 = vmul.f32 %v416, %v421
    %v425 = vmul.f32 %v417, %v421
    %v426 = vlaneseq
    %v427 = vshrl.u32 %v426, 7
    %v428 = vsub.s32 0, %v427
    %v429 = vrot.slane %v23, %v428
    %v430 = vadd.f32 %v422, %v429
    %v431 = vadd.f32 %v423, %v429
    %v432 = vadd.f32 %v424, %v429
    %v433 = vadd.f32 %v425, %v429
    %v434 = vmax.f32 %v430, 0.0
    %v435 = vmax.f32 %v431, 0.0
    %v436 = vmax.f32 %v432, 0.0
    %v437 = vmax.f32 %v433, 0.0
    %v438 = vsel %vm341, %v434, 0.0
    %v439 = vsel %vm341, %v435, 0.0
    %v440 = vadd.f32 %v438, %v439
    %v441 = vrot.slane %v440, 4
    %v442 = vadd.f32 %v440, %v441
    %v443 = vrot.slane %v442, 2
    %v444 = vadd.f32 %v442, %v443
    %v445 = vrot.slane %v444, 1
    %v446 = vadd.f32 %v444, %v445
    %v447 = vmul.f32 %v446, %v148
    %v448 = vsel %vm341, %v436, 0.0
    %v449 = vsel %vm341, %v437, 0.0
    %v450 = vadd.f32 %v448, %v449
    %v451 = vrot.slane %v450, 4
    %v452 = vadd.f32 %v450, %v451
    %v453 = vrot.slane %v452, 2
    %v454 = vadd.f32 %v452, %v453
    %v455 = vrot.slane %v454, 1
    %v456 = vadd.f32 %v454, %v455
    %v457 = vmul.f32 %v456, %v148
    %v458 = vmul.f32 %v434, %v434
    %v459 = vmul.f32 %v435, %v435
    %v460 = vsel %vm341, %v458, 0.0
    %v461 = vsel %vm341, %v459, 0.0
    %v462 = vadd.f32 %v460, %v461
    %v463 = vrot.slane %v462, 4
    %v464 = vadd.f32 %v462, %v463
    %v465 = vrot.slane %v464, 2
    %v466 = vadd.f32 %v464, %v465
    %v467 = vrot.slane %v466, 1
    %v468 = vadd.f32 %v466, %v467
    %v469 = vmul.f32 %v468, %v148
    %v470 = vmul.f32 %v436, %v436
    %v471 = vmul.f32 %v437, %v437
    %v472 = vsel %vm341, %v470, 0.0
    %v473 = vsel %vm341, %v471, 0.0
    %v474 = vadd.f32 %v472, %v473
    %v475 = vrot.slane %v474, 4
    %v476 = vadd.f32 %v474, %v475
    %v477 = vrot.slane %v476, 2
    %v478 = vadd.f32 %v476, %v477
    %v479 = vrot.slane %v478, 1
    %v480 = vadd.f32 %v478, %v479
    %v481 = vmul.f32 %v480, %v148
    %v482 = vsel %vm188, %v447, %v457
    %v483 = vsel %vm189, %v447, %v457
    %v484 = vsel %vm190, %v447, %v457
    %v485 = vsel %vm191, %v447, %v457
    %v486 = vsel %vm188, %v469, %v481
    %v487 = vsel %vm189, %v469, %v481
    %v488 = vsel %vm190, %v469, %v481
    %v489 = vsel %vm191, %v469, %v481
    %v490 = vmul.f32 %v482, %v482
    %v491 = vmul.f32 %v483, %v483
    %v492 = vmul.f32 %v484, %v484
    %v493 = vmul.f32 %v485, %v485
    %v494 = vsub.f32 %v486, %v490
    %v495 = vsub.f32 %v487, %v491
    %v496 = vsub.f32 %v488, %v492
    %v497 = vsub.f32 %v489, %v493
    %v498 = vsub.f32 %v434, %v482
    %v499 = vsub.f32 %v435, %v483
    %v500 = vsub.f32 %v436, %v484
    %v501 = vsub.f32 %v437, %v485
    %v502 = vadd.f32 %v494, 1e-05
    %v503 = vadd.f32 %v495, 1e-05
    %v504 = vadd.f32 %v496, 1e-05
    %v505 = vadd.f32 %v497, 1e-05
    %v506 = vrsqrt.pop %v502
    %v507 = vrsqrt.pop %v503
    %v508 = vrsqrt.pop %v504
    %v509 = vrsqrt.pop %v505
    %v510 = vmul.f32 %v498, %v506
    %v511 = vmul.f32 %v499, %v507
    %v512 = vmul.f32 %v500, %v508
    %v513 = vmul.f32 %v501, %v509
    %v515 = vsel %vm341, %v510, 0
    %v518 = vsel %vm341, %v511, 0
    %v521 = vsel %vm341, %v512, 0
    %v524 = vsel %vm341, %v513, 0
    %526 = vmatprep.subr.mxu0 0.0
    %527 = vmatpush1.msra.mxu0 %v18
    %528 = vmatprep.subr.mxu0 0.0
    %529 = vmatpush1.msra.mxu0 0.0
    %530 = vmatprep.subr.mxu0 0.0
    %531 = vmatpush1.msra.mxu0 0.0
    %532 = vmatprep.subr.mxu0 0.0
    %533 = vmatpush1.msra.mxu0 0.0
    %534 = vmatprep.subr.mxu0 0.0
    %535 = vmatpush1.msra.mxu0 0.0
    %536 = vmatprep.subr.mxu0 0.0
    %537 = vmatpush1.msra.mxu0 0.0
    %538 = vmatprep.subr.mxu0 0.0
    %539 = vmatpush1.msra.mxu0 0.0
    %540 = vmatprep.subr.mxu0 0.0
    %541 = vmatpush1.msra.mxu0 0.0
    %542 = vmatprep.subr.mxu0 0.0
    %543 = vmatpush1.msra.mxu0 0.0
    %544 = vmatprep.subr.mxu0 0.0
    %545 = vmatpush1.msra.mxu0 0.0
    %546 = vmatprep.subr.mxu0 0.0
    %547 = vmatpush1.msra.mxu0 0.0
    %548 = vmatprep.subr.mxu0 0.0
    %549 = vmatpush1.msra.mxu0 0.0
    %550 = vmatprep.subr.mxu0 0.0
    %551 = vmatpush1.msra.mxu0 0.0
    %552 = vmatprep.subr.mxu0 0.0
    %553 = vmatpush1.msra.mxu0 0.0
    %554 = vmatprep.subr.mxu0 0.0
    %555 = vmatpush1.msra.mxu0 0.0
    %556 = vmatprep.subr.mxu0 0.0
    %557 = vmatpush1.msra.mxu0 0.0
    %558 = vmatprep.subr.mxu0 0.0
    %559 = vmatpush1.msra.mxu0 0.0
    %560 = vmatprep.subr.mxu0 0.0
    %561 = vmatpush1.msra.mxu0 0.0
    %562 = vmatprep.subr.mxu0 0.0
    %563 = vmatpush1.msra.mxu0 0.0
    %564 = vmatprep.subr.mxu0 0.0
    %565 = vmatpush1.msra.mxu0 0.0
    %566 = vmatprep.subr.mxu0 0.0
    %567 = vmatpush1.msra.mxu0 0.0
    %568 = vmatprep.subr.mxu0 0.0
    %569 = vmatpush1.msra.mxu0 0.0
    %570 = vmatprep.subr.mxu0 0.0
    %571 = vmatpush1.msra.mxu0 0.0
    %572 = vmatprep.subr.mxu0 0.0
    %573 = vmatpush1.msra.mxu0 0.0
    %574 = vmatprep.subr.mxu0 0.0
    %575 = vmatpush1.msra.mxu0 0.0
    %576 = vmatprep.subr.mxu0 0.0
    %577 = vmatpush1.msra.mxu0 0.0
    %578 = vmatprep.subr.mxu0 0.0
    %579 = vmatpush1.msra.mxu0 0.0
    %580 = vmatprep.subr.mxu0 0.0
    %581 = vmatpush1.msra.mxu0 0.0
    %582 = vmatprep.subr.mxu0 0.0
    %583 = vmatpush1.msra.mxu0 0.0
    %584 = vmatprep.subr.mxu0 0.0
    %585 = vmatpush1.msra.mxu0 0.0
    %586 = vmatprep.subr.mxu0 0.0
    %587 = vmatpush1.msra.mxu0 0.0
    %588 = vmatprep.subr.mxu0 0.0
    %589 = vmatpush1.msra.mxu0 0.0
    %590 = vmatprep.mubr.f32.mxu0 0.0
    %591 = vmatmul.mubr.f32.gmra.mrb[0].mxu0 %v515
    %v592 = vpop.f32.mrb[0].mxu0
    %v593 = vadd.f32 0.0, %v592
    %v594 = vpop.f32.mrb[0].mxu0
    %595 = vmatprep.mubr.f32.mxu0 0.0
    %596 = vmatmul.mubr.f32.gmra.mrb[0].mxu0 %v518
    %v597 = vpop.f32.mrb[0].mxu0
    %v598 = vadd.f32 0.0, %v597
    %v599 = vpop.f32.mrb[0].mxu0
    %600 = vmatprep.mubr.f32.mxu0 0.0
    %601 = vmatmul.mubr.f32.gmra.mrb[0].mxu0 %v521
    %v602 = vpop.f32.mrb[0].mxu0
    %v603 = vadd.f32 0.0, %v602
    %v604 = vpop.f32.mrb[0].mxu0
    %605 = vmatprep.mubr.f32.mxu0 0.0
    %606 = vmatmul.mubr.f32.gmra.mrb[0].mxu0 %v524
    %v607 = vpop.f32.mrb[0].mxu0
    %v608 = vadd.f32 0.0, %v607
    %v609 = vpop.f32.mrb[0].mxu0
    %610 = vdwg.mxu0
    %vm611 = vcmask 31744
    %v612 = vsel %vm611, %v593, 0.0
    %v613 = vsel %vm611, %v598, 0.0
    %v614 = vadd.f32 %v612, %v613
    %v615 = vrot.slane %v614, 4
    %v616 = vadd.f32 %v614, %v615
    %v617 = vrot.slane %v616, 2
    %v618 = vadd.f32 %v616, %v617
    %v619 = vrot.slane %v618, 1
    %v620 = vadd.f32 %v618, %v619
    %v621 = vmul.f32 %v620, %v148
    %v622 = vsel %vm611, %v603, 0.0
    %v623 = vsel %vm611, %v608, 0.0
    %v624 = vadd.f32 %v622, %v623
    %v625 = vrot.slane %v624, 4
    %v626 = vadd.f32 %v624, %v625
    %v627 = vrot.slane %v626, 2
    %v628 = vadd.f32 %v626, %v627
    %v629 = vrot.slane %v628, 1
    %v630 = vadd.f32 %v628, %v629
    %v631 = vmul.f32 %v630, %v148
    %v632 = vmul.f32 %v593, %v593
    %v633 = vmul.f32 %v598, %v598
    %v634 = vsel %vm611, %v632, 0.0
    %v635 = vsel %vm611, %v633, 0.0
    %v636 = vadd.f32 %v634, %v635
    %v637 = vrot.slane %v636, 4
    %v638 = vadd.f32 %v636, %v637
    %v639 = vrot.slane %v638, 2
    %v640 = vadd.f32 %v638, %v639
    %v641 = vrot.slane %v640, 1
    %v642 = vadd.f32 %v640, %v641
    %v643 = vmul.f32 %v642, %v148
    %v644 = vmul.f32 %v603, %v603
    %v645 = vmul.f32 %v608, %v608
    %v646 = vsel %vm611, %v644, 0.0
    %v647 = vsel %vm611, %v645, 0.0
    %v648 = vadd.f32 %v646, %v647
    %v649 = vrot.slane %v648, 4
    %v650 = vadd.f32 %v648, %v649
    %v651 = vrot.slane %v650, 2
    %v652 = vadd.f32 %v650, %v651
    %v653 = vrot.slane %v652, 1
    %v654 = vadd.f32 %v652, %v653
    %v655 = vmul.f32 %v654, %v148
    %v656 = vsel %vm188, %v621, %v631
    %v657 = vsel %vm189, %v621, %v631
    %v658 = vsel %vm190, %v621, %v631
    %v659 = vsel %vm191, %v621, %v631
    %v660 = vsel %vm188, %v643, %v655
    %v661 = vsel %vm189, %v643, %v655
    %v662 = vsel %vm190, %v643, %v655
    %v663 = vsel %vm191, %v643, %v655
    %v664 = vmul.f32 %v656, %v656
    %v665 = vmul.f32 %v657, %v657
    %v666 = vmul.f32 %v658, %v658
    %v667 = vmul.f32 %v659, %v659
    %v668 = vsub.f32 %v660, %v664
    %v669 = vsub.f32 %v661, %v665
    %v670 = vsub.f32 %v662, %v666
    %v671 = vsub.f32 %v663, %v667
    %v672 = vsub.f32 %v593, %v656
    %v673 = vsub.f32 %v598, %v657
    %v674 = vsub.f32 %v603, %v658
    %v675 = vsub.f32 %v608, %v659
    %v676 = vadd.f32 %v668, 1e-05
    %v677 = vadd.f32 %v669, 1e-05
    %v678 = vadd.f32 %v670, 1e-05
    %v679 = vadd.f32 %v671, 1e-05
    %v680 = vrsqrt.pop %v676
    %v681 = vrsqrt.pop %v677
    %v682 = vrsqrt.pop %v678
    %v683 = vrsqrt.pop %v679
    %v684 = vmul.f32 %v672, %v680
    %v685 = vmul.f32 %v673, %v681
    %v686 = vmul.f32 %v674, %v682
    %v687 = vmul.f32 %v675, %v683
    %v688 = vlaneseq
    %v689 = vshrl.u32 %v688, 7
    %v690 = vsub.s32 0, %v689
    %v691 = vrot.slane %v24, %v690
    %v692 = vmul.f32 %v684, %v691
    %v693 = vmul.f32 %v685, %v691
    %v694 = vmul.f32 %v686, %v691
    %v695 = vmul.f32 %v687, %v691
    %v696 = vlaneseq
    %v697 = vshrl.u32 %v696, 7
    %v698 = vsub.s32 0, %v697
    %v699 = vrot.slane %v25, %v698
    %v700 = vadd.f32 %v692, %v699
    %v701 = vadd.f32 %v693, %v699
    %v702 = vadd.f32 %v694, %v699
    %v703 = vadd.f32 %v695, %v699
    %v704 = vmax.f32 %v700, 0.0
    %v705 = vmax.f32 %v701, 0.0
    %v706 = vmax.f32 %v702, 0.0
    %v707 = vmax.f32 %v703, 0.0
    %v708 = vlaneseq
    %v709 = vshrl.u32 %v708, 7
    %v710 = vsub.s32 0, %v709
    %v711 = vrot.slane %v26, %v710
    %v713 = vsel %vm611, %v704, 0
    %v716 = vsel %vm611, %v705, 0
    %v719 = vsel %vm611, %v706, 0
    %v722 = vsel %vm611, %v707, 0
    %vm724 = vcmask 1043456
    %v726 = vsel %vm724, %v19, 0
    %728 = vmatprep.subr.mxu0 0.0
    %729 = vmatpush1.msra.mxu0 %v726
    %730 = vmatprep.subr.mxu0 0.0
    %731 = vmatpush1.msra.mxu0 0.0
    %732 = vmatprep.subr.mxu0 0.0
    %733 = vmatpush1.msra.mxu0 0.0
    %734 = vmatprep.subr.mxu0 0.0
    %735 = vmatpush1.msra.mxu0 0.0
    %736 = vmatprep.subr.mxu0 0.0
    %737 = vmatpush1.msra.mxu0 0.0
    %738 = vmatprep.subr.mxu0 0.0
    %739 = vmatpush1.msra.mxu0 0.0
    %740 = vmatprep.subr.mxu0 0.0
    %741 = vmatpush1.msra.mxu0 0.0
    %742 = vmatprep.subr.mxu0 0.0
    %743 = vmatpush1.msra.mxu0 0.0
    %744 = vmatprep.subr.mxu0 0.0
    %745 = vmatpush1.msra.mxu0 0.0
    %746 = vmatprep.subr.mxu0 0.0
    %747 = vmatpush1.msra.mxu0 0.0
    %748 = vmatprep.subr.mxu0 0.0
    %749 = vmatpush1.msra.mxu0 0.0
    %750 = vmatprep.subr.mxu0 0.0
    %751 = vmatpush1.msra.mxu0 0.0
    %752 = vmatprep.subr.mxu0 0.0
    %753 = vmatpush1.msra.mxu0 0.0
    %754 = vmatprep.subr.mxu0 0.0
    %755 = vmatpush1.msra.mxu0 0.0
    %756 = vmatprep.subr.mxu0 0.0
    %757 = vmatpush1.msra.mxu0 0.0
    %758 = vmatprep.subr.mxu0 0.0
    %759 = vmatpush1.msra.mxu0 0.0
    %760 = vmatprep.subr.mxu0 0.0
    %761 = vmatpush1.msra.mxu0 0.0
    %762 = vmatprep.subr.mxu0 0.0
    %763 = vmatpush1.msra.mxu0 0.0
    %764 = vmatprep.subr.mxu0 0.0
    %765 = vmatpush1.msra.mxu0 0.0
    %766 = vmatprep.subr.mxu0 0.0
    %767 = vmatpush1.msra.mxu0 0.0
    %768 = vmatprep.subr.mxu0 0.0
    %769 = vmatpush1.msra.mxu0 0.0
    %770 = vmatprep.subr.mxu0 0.0
    %771 = vmatpush1.msra.mxu0 0.0
    %772 = vmatprep.subr.mxu0 0.0
    %773 = vmatpush1.msra.mxu0 0.0
    %774 = vmatprep.subr.mxu0 0.0
    %775 = vmatpush1.msra.mxu0 0.0
    %776 = vmatprep.subr.mxu0 0.0
    %777 = vmatpush1.msra.mxu0 0.0
    %778 = vmatprep.subr.mxu0 0.0
    %779 = vmatpush1.msra.mxu0 0.0
    %780 = vmatprep.subr.mxu0 0.0
    %781 = vmatpush1.msra.mxu0 0.0
    %782 = vmatprep.subr.mxu0 0.0
    %783 = vmatpush1.msra.mxu0 0.0
    %784 = vmatprep.subr.mxu0 0.0
    %785 = vmatpush1.msra.mxu0 0.0
    %786 = vmatprep.subr.mxu0 0.0
    %787 = vmatpush1.msra.mxu0 0.0
    %788 = vmatprep.subr.mxu0 0.0
    %789 = vmatpush1.msra.mxu0 0.0
    %790 = vmatprep.subr.mxu0 0.0
    %791 = vmatpush1.msra.mxu0 0.0
    %792 = vmatprep.mubr.f32.mxu0 0.0
    %793 = vmatmul.mubr.f32.gmra.mrb[0].mxu0 %v713
    %v794 = vpop.f32.mrb[0].mxu0
    %v795 = vadd.f32 %v711, %v794
    %v796 = vpop.f32.mrb[0].mxu0
    %797 = vmatprep.mubr.f32.mxu0 0.0
    %798 = vmatmul.mubr.f32.gmra.mrb[0].mxu0 %v716
    %v799 = vpop.f32.mrb[0].mxu0
    %v800 = vadd.f32 %v711, %v799
    %v801 = vpop.f32.mrb[0].mxu0
    %802 = vmatprep.mubr.f32.mxu0 0.0
    %803 = vmatmul.mubr.f32.gmra.mrb[0].mxu0 %v719
    %v804 = vpop.f32.mrb[0].mxu0
    %v805 = vadd.f32 %v711, %v804
    %v806 = vpop.f32.mrb[0].mxu0
    %807 = vmatprep.mubr.f32.mxu0 0.0
    %808 = vmatmul.mubr.f32.gmra.mrb[0].mxu0 %v722
    %v809 = vpop.f32.mrb[0].mxu0
    %v810 = vadd.f32 %v711, %v809
    %v811 = vpop.f32.mrb[0].mxu0
    %812 = vdwg.mxu0
    %813 = vst.msk [vmem:[#allocation2] sm:$0xff] %vm341, %v795
    %814 = vst.msk [vmem:[#allocation2 + $0x8] sm:$0xff] %vm341, %v800
    %817 = vrot.lane.b32.xlu0 %v805, 8
    %v818 = vpop.permute.xlu0 %817
    %819 = vrot.lane.b32.xlu0 %v810, 8
    %v820 = vpop.permute.xlu0 %819
    %vm823 = vcmask 130112
    %824 = vst.msk [vmem:[#allocation2] sm:$0xff] %vm823, %v818
    %825 = vst.msk [vmem:[#allocation2 + $0x8] sm:$0xff] %vm823, %v820
    %826 = vrot.lane.b32.xlu0 %v510, 16
    %v827 = vpop.permute.xlu0 %826
    %828 = vrot.lane.b32.xlu0 %v511, 16
    %v829 = vpop.permute.xlu0 %828
    %vm832 = vcmask 195712
    %833 = vst.msk [vmem:[#allocation2] sm:$0xff] %vm832, %v827
    %834 = vst.msk [vmem:[#allocation2 + $0x8] sm:$0xff] %vm832, %v829
    %835 = vrot.lane.b32.xlu0 %v512, 24
    %v836 = vpop.permute.xlu0 %835
    %837 = vrot.lane.b32.xlu0 %v513, 24
    %v838 = vpop.permute.xlu0 %837
    %vm841 = vcmask 261312
    %842 = vst.msk [vmem:[#allocation2] sm:$0xff] %vm841, %v836
    %843 = vst.msk [vmem:[#allocation2 + $0x8] sm:$0xff] %vm841, %v838
    // Predicated region
    $region10: #{custom_siam_forward.1} parent=1 // pred_check
      _
    $region11: #{custom_siam_forward.1} parent=1 // pred_check_branch
      %845 = sbr.rel (0) target = $region13
    $region12: #{custom_siam_forward.1} parent=1 // pred_region
      %s847 = ssub.s32 256, 256
      %848 = vsyncadd [#allocation3], %s847
      %s849 = sshll.u32 [#allocation2], 4
      %s850 = int_to_ptr.vmem [resolvable:$true] %s849
      %855 = dma.vmem_to_hbm [thread:$0]  %s850, 256, %s2, [#allocation3], 128, 128, 8
    $region13: #{custom_siam_forward.1} parent=1 // pred_fallthru
      _
    // Predicated region
    $region14: #{custom_siam_forward.1} parent=1 // pred_check
      _
    $region15: #{custom_siam_forward.1} parent=1 // pred_check_branch
      %857 = sbr.rel (0) target = $region17
    $region16: #{custom_siam_forward.1} parent=1 // pred_region
      %858 = dma.done [#allocation3], 256
    $region17: #{custom_siam_forward.1} parent=1 // pred_fallthru
      _
    %859 = vsyncpa [#allocation3], 1

</llo_original>
